<compile_context>
chip_gen: v6e
topology: v6e:2x2x1
jax: 0.10.0
libtpu: 0.0.40
codegen_flags: <defaults>
</compile_context>

<pallas_src>
import jax
import jax.numpy as jnp
from jax import lax
from jax.experimental import pallas as pl
from jax.experimental.pallas import tpu as pltpu


# ----------------------------- kernels --------------------------------------

def conv_bn_relu_kernel(x_ref, w_ref, shift_ref, o_ref):
    # x_ref: (1, C, B, F) VMEM block (one batch element)
    # w_ref: (1, C) SMEM  -- conv weight pre-multiplied by the BN scale
    # shift_ref: (1, 1) SMEM -- folded BN shift
    # o_ref: (1, B, F)
    C = x_ref.shape[1]
    acc = x_ref[0, 0, :, :] * w_ref[0, 0]
    for c in range(1, C):          # C is small & static (1x1 conv channel reduce)
        acc = acc + x_ref[0, c, :, :] * w_ref[0, c]
    o_ref[0, :, :] = jnp.maximum(acc + shift_ref[0, 0], 0.0)


def _make_bilstm_dense_kernel(T, N, H):
    G = 4 * H

    def kernel(x_ref, wih_ref, b_ref, whhf_ref, whhb_ref,
               wdf_ref, wdb_ref, bd_ref, o_ref,
               gx_ref, hf_buf, hb_buf):
        # x_ref:    (T*N, D) f32      time-major rows (row = t*N + n)
        # wih_ref:  (D, 8H) bf16      [W_ih_f^T | W_ih_b^T]
        # b_ref:    (1, 8H) f32       [b_ih_f+b_hh_f | b_ih_b+b_hh_b]
        # whh*_ref: (H, 4H) bf16
        # wd*_ref:  (H, nbins) bf16   dense weight split per direction
        # bd_ref:   (1, nbins) f32
        # o_ref:    (T*N, nbins) f32
        # gx_ref:   (T*N, 8H) f32 scratch  -- hoisted input projection
        # hf_buf/hb_buf: (T*N, H) f32 scratch -- per-direction hidden states

        # 1) hoisted input projection for BOTH directions: one big MXU matmul.
        gx_ref[...] = (
            jnp.dot(x_ref[...].astype(jnp.bfloat16), wih_ref[...],
                    preferred_element_type=jnp.float32) + b_ref[...])

        whhf = whhf_ref[...]
        whhb = whhb_ref[...]

        def cell(g_pre, h, c, whh):
            g = g_pre + jnp.dot(h.astype(jnp.bfloat16), whh,
                                preferred_element_type=jnp.float32)
            i = jax.nn.sigmoid(g[:, 0:H])
            f = jax.nn.sigmoid(g[:, H:2 * H])
            gg = jnp.tanh(g[:, 2 * H:3 * H])
            o = jax.nn.sigmoid(g[:, 3 * H:4 * H])
            c_new = f * c + i * gg
            h_new = o * jnp.tanh(c_new)
            return h_new, c_new

        zeros = jnp.zeros((N, H), jnp.float32)

        # 2) forward & backward recurrences interleaved in one loop.
        def body(s, carry):
            hf, cf, hb, cb = carry
            rf = pl.multiple_of(s * N, N)
            rb = pl.multiple_of((T - 1 - s) * N, N)
            gf = gx_ref[pl.ds(rf, N), :]
            gb = gx_ref[pl.ds(rb, N), :]
            hf, cf = cell(gf[:, 0:G], hf, cf, whhf)
            hb, cb = cell(gb[:, G:2 * G], hb, cb, whhb)
            hf_buf[pl.ds(rf, N), :] = hf
            hb_buf[pl.ds(rb, N), :] = hb
            return (hf, cf, hb, cb)

        lax.fori_loop(0, T, body, (zeros, zeros, zeros, zeros))

        # 3) fused dense + ReLU: per-direction weights avoid a lane concat and
        #    give one big M = T*N MXU matmul per direction.
        acc = (jnp.dot(hf_buf[...].astype(jnp.bfloat16), wdf_ref[...],
                       preferred_element_type=jnp.float32)
               + jnp.dot(hb_buf[...].astype(jnp.bfloat16), wdb_ref[...],
                         preferred_element_type=jnp.float32)
               + bd_ref[...])
        o_ref[...] = jnp.maximum(acc, 0.0)

    return kernel


# ----------------------------- wrapper ---------------------------------------

def lstm_module_forward(x, params):
    N, C, nbins, nframes = x.shape
    T = nframes
    eps = 1e-5

    H = params["lstm_whh_f"].shape[1]
    nin_lstm, nout_lstm = params["dense_w"].shape
    assert nin_lstm == nbins, "LSTMModule requires nin_lstm == nbins"
    assert nout_lstm == 2 * H

    # Fold BN (eval mode) into the 1x1 conv: per-channel scale + shift.
    scale = params["bn_gamma"] / jnp.sqrt(params["bn_var"] + eps)
    w_eff = (params["conv_w"] * scale).reshape(1, C).astype(jnp.float32)
    shift = (params["bn_beta"] - params["bn_mean"] * scale).reshape(1, 1).astype(jnp.float32)

    conv_out = pl.pallas_call(
        conv_bn_relu_kernel,
        out_shape=jax.ShapeDtypeStruct((N, nbins, nframes), jnp.float32),
        grid=(N,),
        in_specs=[
            pl.BlockSpec((1, C, nbins, nframes), lambda n: (n, 0, 0, 0)),
            pl.BlockSpec((1, C), lambda n: (0, 0),
                         memory_space=pltpu.MemorySpace.SMEM),
            pl.BlockSpec((1, 1), lambda n: (0, 0),
                         memory_space=pltpu.MemorySpace.SMEM),
        ],
        out_specs=pl.BlockSpec((1, nbins, nframes), lambda n: (n, 0, 0)),
        compiler_params=pltpu.CompilerParams(dimension_semantics=("parallel",)),
    )(x, w_eff, shift)

    # (N, B, F) -> (F, N, B) -> (T*N, D): time-major rows for the fused kernel.
    # TODO(synk): at production sizes fold this layout change into the conv
    # kernel's output BlockSpec instead of an XLA transpose between kernels.
    h2d = jnp.transpose(conv_out, (2, 0, 1)).reshape(T * N, nbins)

    # MXU operands in bf16; biases / accumulation stay f32.
    bf16 = jnp.bfloat16
    wih_cat = jnp.concatenate(
        [params["lstm_wih_f"].T, params["lstm_wih_b"].T], axis=1).astype(bf16)   # (D, 8H)
    b_cat = jnp.concatenate(
        [params["lstm_bih_f"] + params["lstm_bhh_f"],
         params["lstm_bih_b"] + params["lstm_bhh_b"]]).reshape(1, 8 * H).astype(jnp.float32)
    whhf = params["lstm_whh_f"].T.astype(bf16)                                    # (H, 4H)
    whhb = params["lstm_whh_b"].T.astype(bf16)
    wdf = params["dense_w"][:, :H].T.astype(bf16)                                 # (H, nbins)
    wdb = params["dense_w"][:, H:].T.astype(bf16)
    bd = params["dense_b"].reshape(1, nin_lstm).astype(jnp.float32)

    vmem = pl.BlockSpec(memory_space=pltpu.MemorySpace.VMEM)
    out2d = pl.pallas_call(
        _make_bilstm_dense_kernel(T, N, H),
        out_shape=jax.ShapeDtypeStruct((T * N, nin_lstm), jnp.float32),
        in_specs=[vmem] * 8,
        out_specs=vmem,
        scratch_shapes=[
            pltpu.VMEM((T * N, 8 * H), jnp.float32),
            pltpu.VMEM((T * N, H), jnp.float32),
            pltpu.VMEM((T * N, H), jnp.float32),
        ],
    )(h2d, wih_cat, b_cat, whhf, whhb, wdf, wdb, bd)

    # rows are (t, n)-ordered -> (N, 1, nbins, nframes), matching PyTorch.
    out = jnp.transpose(out2d.reshape(T, N, 1, nbins), (1, 2, 3, 0))
    return out


# ----------------------------- params + reference ----------------------------

def init_params(key, nin_conv, nin_lstm, nout_lstm):
    H = nout_lstm // 2
    ks = jax.random.split(key, 11)

    def u(k, shape, bound):
        return jax.random.uniform(k, shape, jnp.float32, -bound, bound)

    kconv = 1.0 / (nin_conv ** 0.5)
    klstm = 1.0 / (H ** 0.5)
    kdense = 1.0 / (nout_lstm ** 0.5)
    return dict(
        conv_w=u(ks[0], (nin_conv,), kconv),
        bn_gamma=jnp.float32(1.0), bn_beta=jnp.float32(0.0),
        bn_mean=jnp.float32(0.0), bn_var=jnp.float32(1.0),
        lstm_wih_f=u(ks[1], (4 * H, nin_lstm), klstm),
        lstm_whh_f=u(ks[2], (4 * H, H), klstm),
        lstm_bih_f=u(ks[3], (4 * H,), klstm),
        lstm_bhh_f=u(ks[4], (4 * H,), klstm),
        lstm_wih_b=u(ks[5], (4 * H, nin_lstm), klstm),
        lstm_whh_b=u(ks[6], (4 * H, H), klstm),
        lstm_bih_b=u(ks[7], (4 * H,), klstm),
        lstm_bhh_b=u(ks[8], (4 * H,), klstm),
        dense_w=u(ks[9], (nin_lstm, nout_lstm), kdense),
        dense_b=u(ks[10], (nin_lstm,), kdense),
    )


def reference_forward(x, params):
    # Pure-JAX (f32) reference mirroring the PyTorch forward (BN in eval mode).
    N, C, nbins, nframes = x.shape
    s = jnp.einsum('ncbf,c->nbf', x, params["conv_w"])
    scale = params["bn_gamma"] / jnp.sqrt(params["bn_var"] + 1e-5)
    s = jnp.maximum(scale * (s - params["bn_mean"]) + params["bn_beta"], 0.0)
    h = jnp.transpose(s, (2, 0, 1))
    H = params["lstm_whh_f"].shape[1]

    def run_dir(wih, whh, b, reverse):
        def step(carry, xt):
            hp, cp = carry
            g = xt @ wih.T + hp @ whh.T + b
            i = jax.nn.sigmoid(g[:, :H])
            f = jax.nn.sigmoid(g[:, H:2 * H])
            gg = jnp.tanh(g[:, 2 * H:3 * H])
            o = jax.nn.sigmoid(g[:, 3 * H:])
            c = f * cp + i * gg
            hh = o * jnp.tanh(c)
            return (hh, c), hh
        init = (jnp.zeros((N, H), jnp.float32), jnp.zeros((N, H), jnp.float32))
        _, ys = lax.scan(step, init, h, reverse=reverse)
        return ys

    hf = run_dir(params["lstm_wih_f"], params["lstm_whh_f"],
                 params["lstm_bih_f"] + params["lstm_bhh_f"], False)
    hb = run_dir(params["lstm_wih_b"], params["lstm_whh_b"],
                 params["lstm_bih_b"] + params["lstm_bhh_b"], True)
    hl = jnp.concatenate([hf, hb], axis=-1).reshape(nframes * N, 2 * H)
    d = jnp.maximum(hl @ params["dense_w"].T + params["dense_b"], 0.0)
    return jnp.transpose(d.reshape(nframes, N, 1, nbins), (1, 2, 3, 0))


# ----------------------------- main -------------------------------------------

if __name__ == "__main__":
    N, nin_conv, nbins, nframes = 2, 4, 16, 8
    nin_lstm, nout_lstm = nbins, 32           # nin_lstm must equal nbins

    key = jax.random.PRNGKey(0)
    kx, kp = jax.random.split(key)
    x = jax.random.normal(kx, (N, nin_conv, nbins, nframes), jnp.float32)
    params = init_params(kp, nin_conv, nin_lstm, nout_lstm)

    out = jax.jit(lstm_module_forward)(x, params)
    out = jax.block_until_ready(out)
    assert out.shape == (N, 1, nbins, nframes), out.shape

    ref = reference_forward(x, params)
    max_err = float(jnp.max(jnp.abs(out - ref)))
    # MXU operands are bf16 (f32 accumulation / gates / cell state), so use a
    # slightly looser tolerance than a pure-f32 comparison.
    assert max_err < 5e-2, f"mismatch vs reference, max_err={max_err}"

    print("KERNEL_OK")
</pallas_src>

<mosaic_0001>
module attributes {stable_mosaic.version = 11 : i64} {
  func.func @conv_bn_relu_kernel(%arg0: i32, %arg1: memref<1x4x16x8xf32, #tpu.memory_space<vmem>>, %arg2: memref<1x4xf32, #tpu.memory_space<smem>>, %arg3: memref<1x1xf32, #tpu.memory_space<smem>>, %arg4: memref<1x16x8xf32, #tpu.memory_space<vmem>>) attributes {dimension_semantics = [#tpu.dimension_semantics<parallel>], iteration_bounds = array<i64: 2>, scalar_prefetch = 0 : i64, scratch_operands = 0 : i64, tpu.core_type = #tpu.core_type<tc>, window_params = [{transform_indices = @transform_0, window_bounds = array<i64: 1, 4, 16, 8>}, {transform_indices = @transform_1, window_bounds = array<i64: 1, 4>}, {transform_indices = @transform_2, window_bounds = array<i64: 1, 1>}, {transform_indices = @transform_3, window_bounds = array<i64: 1, 16, 8>}]} {
    %c0 = arith.constant 0 : index
    %c0_0 = arith.constant 0 : index
    %c0_1 = arith.constant 0 : index
    %c0_2 = arith.constant 0 : index
    %0 = vector.load %arg1[%c0, %c0_0, %c0_1, %c0_2] : memref<1x4x16x8xf32, #tpu.memory_space<vmem>>, vector<1x1x16x8xf32>
    %1 = vector.shape_cast %0 : vector<1x1x16x8xf32> to vector<16x8xf32>
    %c0_3 = arith.constant 0 : index
    %c0_4 = arith.constant 0 : index
    %2 = memref.load %arg2[%c0_3, %c0_4] : memref<1x4xf32, #tpu.memory_space<smem>>
    %3 = vector.broadcast %2 : f32 to vector<16x8xf32>
    %4 = arith.mulf %1, %3 : vector<16x8xf32>
    %c0_5 = arith.constant 0 : index
    %c1 = arith.constant 1 : index
    %c0_6 = arith.constant 0 : index
    %c0_7 = arith.constant 0 : index
    %5 = vector.load %arg1[%c0_5, %c1, %c0_6, %c0_7] : memref<1x4x16x8xf32, #tpu.memory_space<vmem>>, vector<1x1x16x8xf32>
    %6 = vector.shape_cast %5 : vector<1x1x16x8xf32> to vector<16x8xf32>
    %c0_8 = arith.constant 0 : index
    %c1_9 = arith.constant 1 : index
    %7 = memref.load %arg2[%c0_8, %c1_9] : memref<1x4xf32, #tpu.memory_space<smem>>
    %8 = vector.broadcast %7 : f32 to vector<16x8xf32>
    %9 = arith.mulf %6, %8 : vector<16x8xf32>
    %10 = arith.addf %4, %9 : vector<16x8xf32>
    %c0_10 = arith.constant 0 : index
    %c2 = arith.constant 2 : index
    %c0_11 = arith.constant 0 : index
    %c0_12 = arith.constant 0 : index
    %11 = vector.load %arg1[%c0_10, %c2, %c0_11, %c0_12] : memref<1x4x16x8xf32, #tpu.memory_space<vmem>>, vector<1x1x16x8xf32>
    %12 = vector.shape_cast %11 : vector<1x1x16x8xf32> to vector<16x8xf32>
    %c0_13 = arith.constant 0 : index
    %c2_14 = arith.constant 2 : index
    %13 = memref.load %arg2[%c0_13, %c2_14] : memref<1x4xf32, #tpu.memory_space<smem>>
    %14 = vector.broadcast %13 : f32 to vector<16x8xf32>
    %15 = arith.mulf %12, %14 : vector<16x8xf32>
    %16 = arith.addf %10, %15 : vector<16x8xf32>
    %c0_15 = arith.constant 0 : index
    %c3 = arith.constant 3 : index
    %c0_16 = arith.constant 0 : index
    %c0_17 = arith.constant 0 : index
    %17 = vector.load %arg1[%c0_15, %c3, %c0_16, %c0_17] : memref<1x4x16x8xf32, #tpu.memory_space<vmem>>, vector<1x1x16x8xf32>
    %18 = vector.shape_cast %17 : vector<1x1x16x8xf32> to vector<16x8xf32>
    %c0_18 = arith.constant 0 : index
    %c3_19 = arith.constant 3 : index
    %19 = memref.load %arg2[%c0_18, %c3_19] : memref<1x4xf32, #tpu.memory_space<smem>>
    %20 = vector.broadcast %19 : f32 to vector<16x8xf32>
    %21 = arith.mulf %18, %20 : vector<16x8xf32>
    %22 = arith.addf %16, %21 : vector<16x8xf32>
    %c0_20 = arith.constant 0 : index
    %c0_21 = arith.constant 0 : index
    %23 = memref.load %arg3[%c0_20, %c0_21] : memref<1x1xf32, #tpu.memory_space<smem>>
    %24 = vector.broadcast %23 : f32 to vector<16x8xf32>
    %25 = arith.addf %22, %24 : vector<16x8xf32>
    %cst = arith.constant 0.000000e+00 : f32
    %26 = vector.broadcast %cst : f32 to vector<16x8xf32>
    %27 = arith.maximumf %25, %26 : vector<16x8xf32>
    %c0_22 = arith.constant 0 : index
    %c0_23 = arith.constant 0 : index
    %c0_24 = arith.constant 0 : index
    %28 = vector.load %arg4[%c0_22, %c0_23, %c0_24] : memref<1x16x8xf32, #tpu.memory_space<vmem>>, vector<1x16x8xf32>
    %29 = vector.shape_cast %28 : vector<1x16x8xf32> to vector<16x8xf32>
    %30 = vector.shape_cast %27 : vector<16x8xf32> to vector<1x16x8xf32>
    tpu.vector_store %arg4[%c0_22, %c0_23, %c0_24], %30 {strides = array<i32>} : memref<1x16x8xf32, #tpu.memory_space<vmem>>, vector<1x16x8xf32>,
    return
  }
  func.func @transform_0(%arg0: i32) -> (i32, i32, i32, i32) {
    %c0_i32 = arith.constant 0 : i32
    %c0_i32_0 = arith.constant 0 : i32
    %c0_i32_1 = arith.constant 0 : i32
    %c0_i32_2 = arith.constant 0 : i32
    return %arg0, %c0_i32, %c0_i32_0, %c0_i32_1 : i32, i32, i32, i32
  }
  func.func @transform_1(%arg0: i32) -> (i32, i32) {
    %c0_i32 = arith.constant 0 : i32
    %c0_i32_0 = arith.constant 0 : i32
    %c0_i32_1 = arith.constant 0 : i32
    return %c0_i32, %c0_i32_0 : i32, i32
  }
  func.func @transform_2(%arg0: i32) -> (i32, i32) {
    %c0_i32 = arith.constant 0 : i32
    %c0_i32_0 = arith.constant 0 : i32
    %c0_i32_1 = arith.constant 0 : i32
    return %c0_i32, %c0_i32_0 : i32, i32
  }
  func.func @transform_3(%arg0: i32) -> (i32, i32, i32) {
    %c0_i32 = arith.constant 0 : i32
    %c0_i32_0 = arith.constant 0 : i32
    %c0_i32_1 = arith.constant 0 : i32
    return %arg0, %c0_i32, %c0_i32_0 : i32, i32, i32
  }
}

module attributes {stable_mosaic.version = 11 : i64} {
  func.func @kernel(%arg0: memref<16x16xf32, #tpu.memory_space<vmem>>, %arg1: memref<16x128xbf16, #tpu.memory_space<vmem>>, %arg2: memref<1x128xf32, #tpu.memory_space<vmem>>, %arg3: memref<16x64xbf16, #tpu.memory_space<vmem>>, %arg4: memref<16x64xbf16, #tpu.memory_space<vmem>>, %arg5: memref<16x16xbf16, #tpu.memory_space<vmem>>, %arg6: memref<16x16xbf16, #tpu.memory_space<vmem>>, %arg7: memref<1x16xf32, #tpu.memory_space<vmem>>, %arg8: memref<16x16xf32, #tpu.memory_space<vmem>>, %arg9: memref<16x128xf32, #tpu.memory_space<vmem>>, %arg10: memref<16x16xf32, #tpu.memory_space<vmem>>, %arg11: memref<16x16xf32, #tpu.memory_space<vmem>>) attributes {dimension_semantics = [], scalar_prefetch = 0 : i64, scratch_operands = 3 : i64, tpu.core_type = #tpu.core_type<tc>} {
    %c0 = arith.constant 0 : index
    %c0_0 = arith.constant 0 : index
    %0 = vector.load %arg0[%c0, %c0_0] : memref<16x16xf32, #tpu.memory_space<vmem>>, vector<16x16xf32>
    %1 = arith.truncf %0 : vector<16x16xf32> to vector<16x16xbf16>
    %c0_1 = arith.constant 0 : index
    %c0_2 = arith.constant 0 : index
    %2 = vector.load %arg1[%c0_1, %c0_2] : memref<16x128xbf16, #tpu.memory_space<vmem>>, vector<16x128xbf16>
    %cst = arith.constant dense<0.000000e+00> : vector<16x128xf32>
    %3 = tpu.matmul %1, %2, %cst {dimension_numbers = #tpu.dot_dimension_numbers<[1], [0], [0], [1], [0, 0, 1, 1], [], []>} : vector<16x16xbf16>, vector<16x128xbf16>, vector<16x128xf32> -> vector<16x128xf32>
    %c0_3 = arith.constant 0 : index
    %c0_4 = arith.constant 0 : index
    %4 = vector.load %arg2[%c0_3, %c0_4] : memref<1x128xf32, #tpu.memory_space<vmem>>, vector<1x128xf32>
    %5 = vector.broadcast %4 : vector<1x128xf32> to vector<16x128xf32>
    %6 = arith.addf %3, %5 : vector<16x128xf32>
    %c0_5 = arith.constant 0 : index
    %c0_6 = arith.constant 0 : index
    %7 = vector.load %arg9[%c0_5, %c0_6] : memref<16x128xf32, #tpu.memory_space<vmem>>, vector<16x128xf32>
    tpu.vector_store %arg9[%c0_5, %c0_6], %6 {strides = array<i32>} : memref<16x128xf32, #tpu.memory_space<vmem>>, vector<16x128xf32>,
    %c0_7 = arith.constant 0 : index
    %c0_8 = arith.constant 0 : index
    %8 = vector.load %arg3[%c0_7, %c0_8] : memref<16x64xbf16, #tpu.memory_space<vmem>>, vector<16x64xbf16>
    %c0_9 = arith.constant 0 : index
    %c0_10 = arith.constant 0 : index
    %9 = vector.load %arg4[%c0_9, %c0_10] : memref<16x64xbf16, #tpu.memory_space<vmem>>, vector<16x64xbf16>
    %cst_11 = arith.constant 0.000000e+00 : f32
    %10 = vector.broadcast %cst_11 : f32 to vector<2x16xf32>
    %c0_i32 = arith.constant 0 : i32
    %c8_i32 = arith.constant 8 : i32
    %11 = arith.addi %c0_i32, %c8_i32 : i32
    %c1_i32 = arith.constant 1 : i32
    %12:4 = scf.for %arg12 = %c0_i32 to %11 step %c1_i32 iter_args(%arg13 = %10, %arg14 = %10, %arg15 = %10, %arg16 = %10) -> (vector<2x16xf32>, vector<2x16xf32>, vector<2x16xf32>, vector<2x16xf32>)  : i32 {
      %c2_i32 = arith.constant 2 : i32
      %28 = arith.muli %arg12, %c2_i32 : i32
      %29 = tpu.assume_multiple %28, 2 : i32
      %c7_i32 = arith.constant 7 : i32
      %30 = arith.subi %c7_i32, %arg12 : i32
      %c2_i32_28 = arith.constant 2 : i32
      %31 = arith.muli %30, %c2_i32_28 : i32
      %32 = tpu.assume_multiple %31, 2 : i32
      %33 = arith.index_cast %29 : i32 to index
      %c0_29 = arith.constant 0 : index
      %34 = vector.load %arg9[%33, %c0_29] : memref<16x128xf32, #tpu.memory_space<vmem>>, vector<2x128xf32>
      %35 = arith.index_cast %32 : i32 to index
      %c0_30 = arith.constant 0 : index
      %36 = vector.load %arg9[%35, %c0_30] : memref<16x128xf32, #tpu.memory_space<vmem>>, vector<2x128xf32>
      %37 = vector.extract_strided_slice %34 {offsets = [0, 0], sizes = [2, 64], strides = [1, 1]} : vector<2x128xf32> to vector<2x64xf32>
      %38 = arith.truncf %arg13 : vector<2x16xf32> to vector<2x16xbf16>
      %cst_31 = arith.constant dense<0.000000e+00> : vector<2x64xf32>
      %39 = tpu.matmul %38, %8, %cst_31 {dimension_numbers = #tpu.dot_dimension_numbers<[1], [0], [0], [1], [0, 0, 1, 1], [], []>} : vector<2x16xbf16>, vector<16x64xbf16>, vector<2x64xf32> -> vector<2x64xf32>
      %40 = arith.addf %37, %39 : vector<2x64xf32>
      %41 = vector.extract_strided_slice %40 {offsets = [0, 0], sizes = [2, 16], strides = [1, 1]} : vector<2x64xf32> to vector<2x16xf32>
      %42 = arith.negf %41 : vector<2x16xf32>
      %43 = math.exp %42 : vector<2x16xf32>
      %cst_32 = arith.constant 1.000000e+00 : f32
      %44 = vector.broadcast %cst_32 : f32 to vector<2x16xf32>
      %45 = arith.addf %44, %43 : vector<2x16xf32>
      %46 = arith.divf %44, %45 : vector<2x16xf32>
      %47 = vector.extract_strided_slice %40 {offsets = [0, 16], sizes = [2, 16], strides = [1, 1]} : vector<2x64xf32> to vector<2x16xf32>
      %48 = arith.negf %47 : vector<2x16xf32>
      %49 = math.exp %48 : vector<2x16xf32>
      %cst_33 = arith.constant 1.000000e+00 : f32
      %50 = vector.broadcast %cst_33 : f32 to vector<2x16xf32>
      %51 = arith.addf %50, %49 : vector<2x16xf32>
      %52 = arith.divf %50, %51 : vector<2x16xf32>
      %53 = vector.extract_strided_slice %40 {offsets = [0, 32], sizes = [2, 16], strides = [1, 1]} : vector<2x64xf32> to vector<2x16xf32>
      %54 = math.tanh %53 : vector<2x16xf32>
      %55 = vector.extract_strided_slice %40 {offsets = [0, 48], sizes = [2, 16], strides = [1, 1]} : vector<2x64xf32> to vector<2x16xf32>
      %56 = arith.negf %55 : vector<2x16xf32>
      %57 = math.exp %56 : vector<2x16xf32>
      %cst_34 = arith.constant 1.000000e+00 : f32
      %58 = vector.broadcast %cst_34 : f32 to vector<2x16xf32>
      %59 = arith.addf %58, %57 : vector<2x16xf32>
      %60 = arith.divf %58, %59 : vector<2x16xf32>
      %61 = arith.mulf %52, %arg14 : vector<2x16xf32>
      %62 = arith.mulf %46, %54 : vector<2x16xf32>
      %63 = arith.addf %61, %62 : vector<2x16xf32>
      %64 = math.tanh %63 : vector<2x16xf32>
      %65 = arith.mulf %60, %64 : vector<2x16xf32>
      %66 = vector.extract_strided_slice %36 {offsets = [0, 64], sizes = [2, 64], strides = [1, 1]} : vector<2x128xf32> to vector<2x64xf32>
      %67 = arith.truncf %arg15 : vector<2x16xf32> to vector<2x16xbf16>
      %cst_35 = arith.constant dense<0.000000e+00> : vector<2x64xf32>
      %68 = tpu.matmul %67, %9, %cst_35 {dimension_numbers = #tpu.dot_dimension_numbers<[1], [0], [0], [1], [0, 0, 1, 1], [], []>} : vector<2x16xbf16>, vector<16x64xbf16>, vector<2x64xf32> -> vector<2x64xf32>
      %69 = arith.addf %66, %68 : vector<2x64xf32>
      %70 = vector.extract_strided_slice %69 {offsets = [0, 0], sizes = [2, 16], strides = [1, 1]} : vector<2x64xf32> to vector<2x16xf32>
      %71 = arith.negf %70 : vector<2x16xf32>
      %72 = math.exp %71 : vector<2x16xf32>
      %cst_36 = arith.constant 1.000000e+00 : f32
      %73 = vector.broadcast %cst_36 : f32 to vector<2x16xf32>
      %74 = arith.addf %73, %72 : vector<2x16xf32>
      %75 = arith.divf %73, %74 : vector<2x16xf32>
      %76 = vector.extract_strided_slice %69 {offsets = [0, 16], sizes = [2, 16], strides = [1, 1]} : vector<2x64xf32> to vector<2x16xf32>
      %77 = arith.negf %76 : vector<2x16xf32>
      %78 = math.exp %77 : vector<2x16xf32>
      %cst_37 = arith.constant 1.000000e+00 : f32
      %79 = vector.broadcast %cst_37 : f32 to vector<2x16xf32>
      %80 = arith.addf %79, %78 : vector<2x16xf32>
      %81 = arith.divf %79, %80 : vector<2x16xf32>
      %82 = vector.extract_strided_slice %69 {offsets = [0, 32], sizes = [2, 16], strides = [1, 1]} : vector<2x64xf32> to vector<2x16xf32>
      %83 = math.tanh %82 : vector<2x16xf32>
      %84 = vector.extract_strided_slice %69 {offsets = [0, 48], sizes = [2, 16], strides = [1, 1]} : vector<2x64xf32> to vector<2x16xf32>
      %85 = arith.negf %84 : vector<2x16xf32>
      %86 = math.exp %85 : vector<2x16xf32>
      %cst_38 = arith.constant 1.000000e+00 : f32
      %87 = vector.broadcast %cst_38 : f32 to vector<2x16xf32>
      %88 = arith.addf %87, %86 : vector<2x16xf32>
      %89 = arith.divf %87, %88 : vector<2x16xf32>
      %90 = arith.mulf %81, %arg16 : vector<2x16xf32>
      %91 = arith.mulf %75, %83 : vector<2x16xf32>
      %92 = arith.addf %90, %91 : vector<2x16xf32>
      %93 = math.tanh %92 : vector<2x16xf32>
      %94 = arith.mulf %89, %93 : vector<2x16xf32>
      %95 = arith.index_cast %29 : i32 to index
      %c0_39 = arith.constant 0 : index
      %96 = vector.load %arg10[%95, %c0_39] : memref<16x16xf32, #tpu.memory_space<vmem>>, vector<2x16xf32>
      tpu.vector_store %arg10[%95, %c0_39], %65 {strides = array<i32>} : memref<16x16xf32, #tpu.memory_space<vmem>>, vector<2x16xf32>,
      %97 = arith.index_cast %32 : i32 to index
      %c0_40 = arith.constant 0 : index
      %98 = vector.load %arg11[%97, %c0_40] : memref<16x16xf32, #tpu.memory_space<vmem>>, vector<2x16xf32>
      tpu.vector_store %arg11[%97, %c0_40], %94 {strides = array<i32>} : memref<16x16xf32, #tpu.memory_space<vmem>>, vector<2x16xf32>,
      scf.yield %65, %63, %94, %92 : vector<2x16xf32>, vector<2x16xf32>, vector<2x16xf32>, vector<2x16xf32>
    }
    %c8_i32_12 = arith.constant 8 : i32
    %c0_13 = arith.constant 0 : index
    %c0_14 = arith.constant 0 : index
    %13 = vector.load %arg10[%c0_13, %c0_14] : memref<16x16xf32, #tpu.memory_space<vmem>>, vector<16x16xf32>
    %14 = arith.truncf %13 : vector<16x16xf32> to vector<16x16xbf16>
    %c0_15 = arith.constant 0 : index
    %c0_16 = arith.constant 0 : index
    %15 = vector.load %arg5[%c0_15, %c0_16] : memref<16x16xbf16, #tpu.memory_space<vmem>>, vector<16x16xbf16>
    %cst_17 = arith.constant dense<0.000000e+00> : vector<16x16xf32>
    %16 = tpu.matmul %14, %15, %cst_17 {dimension_numbers = #tpu.dot_dimension_numbers<[1], [0], [0], [1], [0, 0, 1, 1], [], []>} : vector<16x16xbf16>, vector<16x16xbf16>, vector<16x16xf32> -> vector<16x16xf32>
    %c0_18 = arith.constant 0 : index
    %c0_19 = arith.constant 0 : index
    %17 = vector.load %arg11[%c0_18, %c0_19] : memref<16x16xf32, #tpu.memory_space<vmem>>, vector<16x16xf32>
    %18 = arith.truncf %17 : vector<16x16xf32> to vector<16x16xbf16>
    %c0_20 = arith.constant 0 : index
    %c0_21 = arith.constant 0 : index
    %19 = vector.load %arg6[%c0_20, %c0_21] : memref<16x16xbf16, #tpu.memory_space<vmem>>, vector<16x16xbf16>
    %cst_22 = arith.constant dense<0.000000e+00> : vector<16x16xf32>
    %20 = tpu.matmul %18, %19, %cst_22 {dimension_numbers = #tpu.dot_dimension_numbers<[1], [0], [0], [1], [0, 0, 1, 1], [], []>} : vector<16x16xbf16>, vector<16x16xbf16>, vector<16x16xf32> -> vector<16x16xf32>
    %21 = arith.addf %16, %20 : vector<16x16xf32>
    %c0_23 = arith.constant 0 : index
    %c0_24 = arith.constant 0 : index
    %22 = vector.load %arg7[%c0_23, %c0_24] : memref<1x16xf32, #tpu.memory_space<vmem>>, vector<1x16xf32>
    %23 = vector.broadcast %22 : vector<1x16xf32> to vector<16x16xf32>
    %24 = arith.addf %21, %23 : vector<16x16xf32>
    %cst_25 = arith.constant 0.000000e+00 : f32
    %25 = vector.broadcast %cst_25 : f32 to vector<16x16xf32>
    %26 = arith.maximumf %24, %25 : vector<16x16xf32>
    %c0_26 = arith.constant 0 : index
    %c0_27 = arith.constant 0 : index
    %27 = vector.load %arg8[%c0_26, %c0_27] : memref<16x16xf32, #tpu.memory_space<vmem>>, vector<16x16xf32>
    tpu.vector_store %arg8[%c0_26, %c0_27], %26 {strides = array<i32>} : memref<16x16xf32, #tpu.memory_space<vmem>>, vector<16x16xf32>,
    return
  }
}

</mosaic_0001>

<llo_original>
// kernel: lstm_module_forward.2
$region0: #{lstm_module_forward.2}
  #allocation0 [shape = 'u32[]', space=smem, size = 0x4, offset = 0x4, fixed_abs, tag = 'smem constant byte address 0x4 - core index']
  #allocation1 [shape = 'u32[144,128]{1,0:T(1,128)}', space=vmem, size = 0x12000, scoped, tag = 'internal scratch']
  #allocation2 [shape = 'f32[1,1]{1,0:T(1,128)S(6)}', space=smem, size = 0x200, scoped, tag = 'scoped memory for lstm_module_forward.2']
  %s0 = inlined_call_operand.vmem [shape: f32[2,4,16,8], index: 0, kind: input, shape index: {}]
  %s1 = inlined_call_operand.vmem [shape: f32[1,4], index: 1, kind: input, shape index: {}]
  %s2 = inlined_call_operand.<no memory space> [shape: f32[1,1], index: 2, kind: input, shape index: {}]
  %s3 = inlined_call_operand.vmem [shape: f32[2,16,8], index: 3, kind: output, shape index: {}]
  %s4 = sld [smem:[#allocation0]]
  $region49: #{lstm_module_forward.2} parent=0
    _
  %s6 = ssub.s32 1, %s4
  %s7 = scalar_select 0, %s6, %s4
  %8 = sst [smem:[#allocation2]] %s2
  $region1: #{lstm_module_forward.2} parent=0
    #allocation3 [shape = 'u8[512]{0}', space=smem, size = 0x200, scoped, tag = 'input window, operand 1, single buffered']
    #allocation4 [shape = 's32[2]{0}', space=sflag, size = 0x8, scoped, tag = 'scoped memory for lstm_module_forward.2']
    %9 = vsyncpa [#allocation4], 0
    loop: start=0, step=1, limit=4
    $region2: #{lstm_module_forward.2} parent=1 // loop_pre_header
      _
    $region3: #{lstm_module_forward.2} parent=1 // loop_header
      %s11 = sphi 0, %s15
      %p12 = scmp.ge.s32.totalorder %s11, 4
      %s21 = sphi 0, %s23
      %s24 = sphi 0, %s21
      %s25 = sphi 0, %s24
      %s41 = sphi 0, %s25
      %s45 = sphi 0, %s45
      %s47 = sphi 0, %s45
      %s48 = sphi 0, %s47
      %s62 = sphi 0, %s48
      %s66 = sphi 0, %s66
      %s68 = sphi 0, %s66
      %s69 = sphi 0, %s68
      %s83 = sphi 0, %s69
      %s89 = sphi 0, %s91
      %s92 = sphi 0, %s89
      %s93 = sphi 0, %s92
      %s109 = sphi 0, %s93
    $region4: #{lstm_module_forward.2} parent=1 // loop_header_branch
      %14 = sbr.rel (%p12) target = $region8
    $region5: #{lstm_module_forward.2} parent=1 // loop_body
      %s16 = ssub.s32 %s11, 1
      %s17 = ssub.s32 %s11, 2
      %s18 = sadd.s32 %s11, 1
      %s19 = ssub.s32 %s11, %s18
      %p20 = scmp.eq.s32.totalorder %s19, 0
      %s22 = sadd.s32 %s21, 1
      %s23 = scalar_select %p20, %s21, %s22
      %p26 = pneg %p20
      %p27 = scmp.eq.s32.totalorder %s11, 1
      %p28 = por %p26, %p27
      %p29 = scmp.ne.s32.totalorder %s21, %s24
      %p30 = scmp.eq.s32.totalorder %s11, 0
      %p31 = por %p29, %p30
      %p32 = scmp.ne.s32.totalorder %s21, %s24
      %p33 = scmp.eq.s32.totalorder %s16, 1
      %p34 = por %p32, %p33
      %p35 = scmp.ne.s32.totalorder %s24, %s25
      %p36 = scmp.eq.s32.totalorder %s16, 0
      %p37 = por %p35, %p36
      %p38 = scmp.ne.s32.totalorder %s24, %s25
      %p39 = scmp.eq.s32.totalorder %s17, 1
      %p40 = por %p38, %p39
      %p42 = scmp.ne.s32.totalorder %s25, %s41
      %p43 = scmp.eq.s32.totalorder %s17, 0
      %p44 = por %p42, %p43
      %s46 = sadd.s32 %s45, 1
      %p49 = scmp.eq.s32.totalorder %s11, 1
      %p50 = scmp.ne.s32.totalorder %s45, %s47
      %p51 = scmp.eq.s32.totalorder %s11, 0
      %p52 = por %p50, %p51
      %p53 = scmp.ne.s32.totalorder %s45, %s47
      %p54 = scmp.eq.s32.totalorder %s16, 1
      %p55 = por %p53, %p54
      %p56 = scmp.ne.s32.totalorder %s47, %s48
      %p57 = scmp.eq.s32.totalorder %s16, 0
      %p58 = por %p56, %p57
      %p59 = scmp.ne.s32.totalorder %s47, %s48
      %p60 = scmp.eq.s32.totalorder %s17, 1
      %p61 = por %p59, %p60
      %p63 = scmp.ne.s32.totalorder %s48, %s62
      %p64 = scmp.eq.s32.totalorder %s17, 0
      %p65 = por %p63, %p64
      %s67 = sadd.s32 %s66, 1
      %p70 = scmp.eq.s32.totalorder %s11, 1
      %p71 = scmp.ne.s32.totalorder %s66, %s68
      %p72 = scmp.eq.s32.totalorder %s11, 0
      %p73 = por %p71, %p72
      %p74 = scmp.ne.s32.totalorder %s66, %s68
      %p75 = scmp.eq.s32.totalorder %s16, 1
      %p76 = por %p74, %p75
      %p77 = scmp.ne.s32.totalorder %s68, %s69
      %p78 = scmp.eq.s32.totalorder %s16, 0
      %p79 = por %p77, %p78
      %p80 = scmp.ne.s32.totalorder %s68, %s69
      %p81 = scmp.eq.s32.totalorder %s17, 1
      %p82 = por %p80, %p81
      %p84 = scmp.ne.s32.totalorder %s69, %s83
      %p85 = scmp.eq.s32.totalorder %s17, 0
      %p86 = por %p84, %p85
      %s87 = ssub.s32 %s11, %s18
      %p88 = scmp.eq.s32.totalorder %s87, 0
      %s90 = sadd.s32 %s89, 1
      %s91 = scalar_select %p88, %s89, %s90
      %p94 = pneg %p88
      %p95 = scmp.eq.s32.totalorder %s11, 1
      %p96 = por %p94, %p95
      %p97 = scmp.ne.s32.totalorder %s89, %s92
      %p98 = scmp.eq.s32.totalorder %s11, 0
      %p99 = por %p97, %p98
      %p100 = scmp.ne.s32.totalorder %s89, %s92
      %p101 = scmp.eq.s32.totalorder %s16, 1
      %p102 = por %p100, %p101
      %p103 = scmp.ne.s32.totalorder %s92, %s93
      %p104 = scmp.eq.s32.totalorder %s16, 0
      %p105 = por %p103, %p104
      %p106 = scmp.ne.s32.totalorder %s92, %s93
      %p107 = scmp.eq.s32.totalorder %s17, 1
      %p108 = por %p106, %p107
      %p110 = scmp.ne.s32.totalorder %s93, %s109
      %p111 = scmp.eq.s32.totalorder %s17, 0
      %p112 = por %p110, %p111
      %p113 = scmp.le.s32.totalorder 1, %s11
      %p114 = scmp.lt.s32.totalorder %s11, 3
      %p115 = pnand %p113, %p114
      %p116 = pneg %p115
      // Predicated region
      $region9: #{lstm_module_forward.2} parent=5 // pred_check
        _
      $region10: #{lstm_module_forward.2} parent=5 // pred_check_branch
        %118 = sbr.rel (%p115) target = $region12
      $region11: #{lstm_module_forward.2} parent=5 // pred_region
        %s119 = ssub.s32 %s11, 1
        // Predicated region
        $region13: #{lstm_module_forward.2} parent=11 // pred_check
          %p120 = pneg %p58
        $region14: #{lstm_module_forward.2} parent=11 // pred_check_branch
          %122 = sbr.rel (%p120) target = $region16
        $region15: #{lstm_module_forward.2} parent=11 // pred_region
          %s124 = ssub.s32 16, 16
          %125 = vsyncadd [#allocation4], %s124
          %s127 = sshll.u32 %s1, 4
          %s128 = int_to_ptr.vmem [resolvable:$true] %s127
          %130 = dma.vmem_to_smem %s128, 16, [#allocation3], [#allocation4]
        $region16: #{lstm_module_forward.2} parent=11 // pred_fallthru
          _
        // Predicated region
        $region17: #{lstm_module_forward.2} parent=11 // pred_check
          %p131 = pneg %p79
        $region18: #{lstm_module_forward.2} parent=11 // pred_check_branch
          %133 = sbr.rel (%p131) target = $region20
        $region19: #{lstm_module_forward.2} parent=11 // pred_region
          _
        $region20: #{lstm_module_forward.2} parent=11 // pred_fallthru
          _
      $region12: #{lstm_module_forward.2} parent=5 // pred_fallthru
        _
      %p134 = scmp.lt.s32.totalorder %s11, 2
      // Predicated region
      $region21: #{lstm_module_forward.2} parent=5 // pred_check
        %p135 = pneg %p134
      $region22: #{lstm_module_forward.2} parent=5 // pred_check_branch
        %137 = sbr.rel (%p135) target = $region24
      $region23: #{lstm_module_forward.2} parent=5 // pred_region
        // Predicated region
        $region25: #{lstm_module_forward.2} parent=23 // pred_check
          %p138 = pneg %p31
        $region26: #{lstm_module_forward.2} parent=23 // pred_check_branch
          %140 = sbr.rel (%p138) target = $region28
        $region27: #{lstm_module_forward.2} parent=23 // pred_region
          %p141 = scmp.lt.s32.totalorder %s11, 1
          %s142 = scalar_select %p141, %s11, 1
          %s143 = smul.addr %s142, 8
          %s144 = smul.addr %s143, 8
          %s145 = scalar_lea.vmem %s0, %s144
        $region28: #{lstm_module_forward.2} parent=23 // pred_fallthru
          _
      $region24: #{lstm_module_forward.2} parent=5 // pred_fallthru
        _
      %p146 = scmp.le.s32.totalorder 1, %s11
      %p147 = scmp.lt.s32.totalorder %s11, 3
      %p148 = pnand %p146, %p147
      %p149 = pneg %p148
      // Predicated region
      $region29: #{lstm_module_forward.2} parent=5 // pred_check
        _
      $region30: #{lstm_module_forward.2} parent=5 // pred_check_branch
        %151 = sbr.rel (%p148) target = $region32
      $region31: #{lstm_module_forward.2} parent=5 // pred_region
        %s152 = ssub.s32 %s11, 1
        // Predicated region
        $region33: #{lstm_module_forward.2} parent=31 // pred_check
          %p153 = pneg %p58
        $region34: #{lstm_module_forward.2} parent=31 // pred_check_branch
          %155 = sbr.rel (%p153) target = $region36
        $region35: #{lstm_module_forward.2} parent=31 // pred_region
          %156 = dma.done [#allocation4], 16
        $region36: #{lstm_module_forward.2} parent=31 // pred_fallthru
          _
        %157 = sfence
        %p158 = scmp.lt.s32.totalorder %s16, 1
        %s159 = scalar_select %p158, %s16, 1
        %s160 = smul.addr %s159, 8
        %s161 = smul.addr %s160, 8
        %s162 = scalar_lea.vmem %s0, %s161
        %p163 = pneg %p37
        %p164 = pneg %p34
        %p165 = pneg %p58
        %p166 = pneg %p55
        %p167 = pneg %p79
        %p168 = pneg %p76
        %p169 = pneg %p105
        %p170 = pneg %p102
        %p171 = scmp.lt.s32.totalorder %s16, 1
        %s172 = scalar_select %p171, %s16, 1
        %s173 = smul.addr %s172, 2
        %s174 = smul.addr %s173, 8
        %s175 = scalar_lea.vmem %s3, %s174
        %p176 = scmp.lt.s32.totalorder %s16, 1
        %s177 = scalar_select %p176, %s16, 1
        %s178 = smul.addr %s177, 8
        %s179 = smul.addr %s178, 8
        %s180 = scalar_lea.vmem %s0, %s179
        %p181 = scmp.lt.s32.totalorder %s16, 1
        %s182 = scalar_select %p181, %s16, 1
        %s183 = smul.addr %s182, 2
        %s184 = smul.addr %s183, 8
        %s185 = scalar_lea.vmem %s3, %s184
        %v186 = vld [vmem:[%s180] sm:$0xff]
        %v187 = vld [vmem:[%s180 + $0x8] sm:$0xff]
        %s188 = sld [smem:[#allocation3]]
        %v189 = vstv %s188
        %v190 = vmul.f32 %v186, %v189
        %v191 = vmul.f32 %v187, %v189
        %s192 = scalar_lea.vmem %s180, 16
        %v193 = vld [vmem:[%s192] sm:$0xff]
        %v194 = vld [vmem:[%s192 + $0x8] sm:$0xff]
        %s195 = sld [smem:[#allocation3 + $0x1]]
        %v196 = vstv %s195
        %v197 = vmul.f32 %v193, %v196
        %v198 = vmul.f32 %v194, %v196
        %v199 = vadd.f32 %v190, %v197
        %v200 = vadd.f32 %v191, %v198
        %s201 = scalar_lea.vmem %s180, 32
        %v202 = vld [vmem:[%s201] sm:$0xff]
        %v203 = vld [vmem:[%s201 + $0x8] sm:$0xff]
        %s204 = sld [smem:[#allocation3 + $0x2]]
        %v205 = vstv %s204
        %v206 = vmul.f32 %v202, %v205
        %v207 = vmul.f32 %v203, %v205
        %v208 = vadd.f32 %v199, %v206
        %v209 = vadd.f32 %v200, %v207
        %s210 = scalar_lea.vmem %s180, 48
        %v211 = vld [vmem:[%s210] sm:$0xff]
        %v212 = vld [vmem:[%s210 + $0x8] sm:$0xff]
        %s213 = sld [smem:[#allocation3 + $0x3]]
        %v214 = vstv %s213
        %v215 = vmul.f32 %v211, %v214
        %v216 = vmul.f32 %v212, %v214
        %v217 = vadd.f32 %v208, %v215
        %v218 = vadd.f32 %v209, %v216
        %s219 = sld [smem:[#allocation2]]
        %v220 = vstv %s219
        %v221 = vadd.f32 %v217, %v220
        %v222 = vadd.f32 %v218, %v220
        %v223 = vmax.f32 %v221, 0.0
        %v224 = vmax.f32 %v222, 0.0
        %vm225 = vcmask 64512
        %226 = vst.msk [vmem:[%s185] sm:$0xff] %vm225, %v223
        %227 = vst.msk [vmem:[%s185 + $0x8] sm:$0xff] %vm225, %v224
        %p228 = scmp.lt.s32.totalorder %s16, 1
        %s229 = scalar_select %p228, %s16, 1
        %s230 = smul.addr %s229, 2
        %s231 = smul.addr %s230, 8
        %s232 = scalar_lea.vmem %s3, %s231
        // Predicated region
        $region37: #{lstm_module_forward.2} parent=31 // pred_check
          %p233 = pneg %p102
        $region38: #{lstm_module_forward.2} parent=31 // pred_check_branch
          %235 = sbr.rel (%p233) target = $region40
        $region39: #{lstm_module_forward.2} parent=31 // pred_region
          _
        $region40: #{lstm_module_forward.2} parent=31 // pred_fallthru
          _
      $region32: #{lstm_module_forward.2} parent=5 // pred_fallthru
        _
      %p236 = scmp.le.s32.totalorder 2, %s11
      // Predicated region
      $region41: #{lstm_module_forward.2} parent=5 // pred_check
        %p237 = pneg %p236
      $region42: #{lstm_module_forward.2} parent=5 // pred_check_branch
        %239 = sbr.rel (%p237) target = $region44
      $region43: #{lstm_module_forward.2} parent=5 // pred_region
        %s240 = ssub.s32 %s11, 2
        // Predicated region
        $region45: #{lstm_module_forward.2} parent=43 // pred_check
          %p241 = pneg %p108
        $region46: #{lstm_module_forward.2} parent=43 // pred_check_branch
          %243 = sbr.rel (%p241) target = $region48
        $region47: #{lstm_module_forward.2} parent=43 // pred_region
          %p244 = scmp.lt.s32.totalorder %s17, 1
          %s245 = scalar_select %p244, %s17, 1
          %s246 = smul.addr %s245, 2
          %s247 = smul.addr %s246, 8
          %s248 = scalar_lea.vmem %s3, %s247
        $region48: #{lstm_module_forward.2} parent=43 // pred_fallthru
          _
      $region44: #{lstm_module_forward.2} parent=5 // pred_fallthru
        _
    $region6: #{lstm_module_forward.2} parent=1 // loop_footer
      %s15 = sadd.s32 1, %s11
    $region7: #{lstm_module_forward.2} parent=1 // loop_footer_branch
      %10 = sbr.rel target = $region3
    $region8: #{lstm_module_forward.2} parent=1 // loop_exit
      _
    %249 = vsyncpa [#allocation4], 1
    %s250 = scalar_lea.sflag [#allocation4], 1
    %251 = vsyncpa %s250, 1

// kernel: lstm_module_forward.3
$region0: #{lstm_module_forward.3}
  #allocation0 [shape = 'u32[]', space=smem, size = 0x4, offset = 0x4, fixed_abs, tag = 'smem constant byte address 0x4 - core index']
  #allocation1 [shape = 'u32[144,128]{1,0:T(1,128)}', space=vmem, size = 0x12000, scoped, tag = 'internal scratch']
  #allocation2 [shape = 'f32[16,128]{1,0:T(8,128)}', space=vmem, size = 0x2000, scoped, tag = 'scratch operand']
  #allocation3 [shape = 'f32[16,16]{1,0:T(8,128)}', space=vmem, size = 0x2000, scoped, tag = 'scratch operand']
  #allocation4 [shape = 'f32[16,16]{1,0:T(8,128)}', space=vmem, size = 0x2000, scoped, tag = 'scratch operand']
  %s0 = inlined_call_operand.vmem [shape: f32[16,16], index: 0, kind: input, shape index: {}]
  %s1 = inlined_call_operand.vmem [shape: bf16[16,128], index: 1, kind: input, shape index: {}]
  %s2 = inlined_call_operand.vmem [shape: f32[1,128], index: 2, kind: input, shape index: {}]
  %s3 = inlined_call_operand.vmem [shape: bf16[16,64], index: 3, kind: input, shape index: {}]
  %s4 = inlined_call_operand.vmem [shape: bf16[16,64], index: 4, kind: input, shape index: {}]
  %s5 = inlined_call_operand.vmem [shape: bf16[16,16], index: 5, kind: input, shape index: {}]
  %s6 = inlined_call_operand.vmem [shape: bf16[16,16], index: 6, kind: input, shape index: {}]
  %s7 = inlined_call_operand.vmem [shape: f32[1,16], index: 7, kind: input, shape index: {}]
  %s8 = inlined_call_operand.vmem [shape: f32[16,16], index: 8, kind: output, shape index: {}]
  %s9 = sld [smem:[#allocation0]]
  $region49: #{lstm_module_forward.3} parent=0
    _
  %s11 = ssub.s32 1, %s9
  %s12 = scalar_select 0, %s11, %s9
  // Predicated region
  $region2: #{lstm_module_forward.3} parent=0 // pred_check
    _
  $region3: #{lstm_module_forward.3} parent=0 // pred_check_branch
    %14 = sbr.rel (0) target = $region5
  $region4: #{lstm_module_forward.3} parent=0 // pred_region
    _
  $region5: #{lstm_module_forward.3} parent=0 // pred_fallthru
    _
  // Predicated region
  $region6: #{lstm_module_forward.3} parent=0 // pred_check
    _
  $region7: #{lstm_module_forward.3} parent=0 // pred_check_branch
    %16 = sbr.rel (0) target = $region9
  $region8: #{lstm_module_forward.3} parent=0 // pred_region
    _
  $region9: #{lstm_module_forward.3} parent=0 // pred_fallthru
    _
  // Predicated region
  $region10: #{lstm_module_forward.3} parent=0 // pred_check
    _
  $region11: #{lstm_module_forward.3} parent=0 // pred_check_branch
    %18 = sbr.rel (0) target = $region13
  $region12: #{lstm_module_forward.3} parent=0 // pred_region
    _
  $region13: #{lstm_module_forward.3} parent=0 // pred_fallthru
    _
  // Predicated region
  $region14: #{lstm_module_forward.3} parent=0 // pred_check
    _
  $region15: #{lstm_module_forward.3} parent=0 // pred_check_branch
    %20 = sbr.rel (0) target = $region17
  $region16: #{lstm_module_forward.3} parent=0 // pred_region
    _
  $region17: #{lstm_module_forward.3} parent=0 // pred_fallthru
    _
  // Predicated region
  $region18: #{lstm_module_forward.3} parent=0 // pred_check
    _
  $region19: #{lstm_module_forward.3} parent=0 // pred_check_branch
    %22 = sbr.rel (0) target = $region21
  $region20: #{lstm_module_forward.3} parent=0 // pred_region
    _
  $region21: #{lstm_module_forward.3} parent=0 // pred_fallthru
    _
  // Predicated region
  $region22: #{lstm_module_forward.3} parent=0 // pred_check
    _
  $region23: #{lstm_module_forward.3} parent=0 // pred_check_branch
    %24 = sbr.rel (0) target = $region25
  $region24: #{lstm_module_forward.3} parent=0 // pred_region
    _
  $region25: #{lstm_module_forward.3} parent=0 // pred_fallthru
    _
  // Predicated region
  $region26: #{lstm_module_forward.3} parent=0 // pred_check
    _
  $region27: #{lstm_module_forward.3} parent=0 // pred_check_branch
    %26 = sbr.rel (0) target = $region29
  $region28: #{lstm_module_forward.3} parent=0 // pred_region
    _
  $region29: #{lstm_module_forward.3} parent=0 // pred_fallthru
    _
  // Predicated region
  $region30: #{lstm_module_forward.3} parent=0 // pred_check
    _
  $region31: #{lstm_module_forward.3} parent=0 // pred_check_branch
    %28 = sbr.rel (0) target = $region33
  $region32: #{lstm_module_forward.3} parent=0 // pred_region
    _
  $region33: #{lstm_module_forward.3} parent=0 // pred_fallthru
    _
  %v30 = vld [vmem:[%s0] sm:$0xff]
  %v31 = vld [vmem:[%s0 + $0x8] sm:$0xff]
  %v32 = vpack.c.bf16 %v31, %v30
  %v33 = vld [vmem:[%s1] sm:$0xf]
  %v34 = vld [vmem:[%s1 + $0x4] sm:$0xf]
  %v35 = vld [vmem:[%s2] sm:$0x1]
  %v37 = vlaneseq
  %v38 = vshrl.u32 %v37, 7
  %v39 = vsub.s32 0, %v38
  %v40 = vrot.slane %v35, %v39
  %v44 = vunpack.c.l.b16 %v33
  %v45 = vunpack.c.l.b16 %v34
  %v46 = vpack.c.b16 %v45, %v44
  %vm48 = vcmask 130048
  %v50 = vsel %vm48, %v32, 0
  %52 = vmatprep.subr.bf16.mxu0 0
  %53 = vmatpush1.bf16.msra.mxu0 0
  %54 = vmatprep.subr.bf16.mxu0 0
  %55 = vmatpush1.bf16.msra.mxu0 0
  %56 = vmatprep.subr.bf16.mxu0 0
  %57 = vmatpush1.bf16.msra.mxu0 0
  %58 = vmatprep.subr.bf16.mxu0 0
  %59 = vmatpush1.bf16.msra.mxu0 0
  %60 = vmatprep.subr.bf16.mxu0 0
  %61 = vmatpush1.bf16.msra.mxu0 0
  %62 = vmatprep.subr.bf16.mxu0 0
  %63 = vmatpush1.bf16.msra.mxu0 0
  %64 = vmatprep.subr.bf16.mxu0 0
  %65 = vmatpush1.bf16.msra.mxu0 0
  %66 = vmatprep.subr.bf16.mxu0 0
  %67 = vmatpush1.bf16.msra.mxu0 %v46
  %68 = vmatprep.subr.bf16.mxu0 0
  %69 = vmatpush2.bf16.msra.mxu0 0
  %70 = vmatprep.subr.bf16.mxu0 0
  %71 = vmatpush2.bf16.msra.mxu0 0
  %72 = vmatprep.subr.bf16.mxu0 0
  %73 = vmatpush2.bf16.msra.mxu0 0
  %74 = vmatprep.subr.bf16.mxu0 0
  %75 = vmatpush2.bf16.msra.mxu0 0
  %76 = vmatprep.subr.bf16.mxu0 0
  %77 = vmatpush2.bf16.msra.mxu0 0
  %78 = vmatprep.subr.bf16.mxu0 0
  %79 = vmatpush2.bf16.msra.mxu0 0
  %80 = vmatprep.subr.bf16.mxu0 0
  %81 = vmatpush2.bf16.msra.mxu0 0
  %82 = vmatprep.subr.bf16.mxu0 0
  %83 = vmatpush2.bf16.msra.mxu0 0
  %84 = vmatprep.mubr.bf16.mxu0 0
  %85 = vmatmul.mubr.bf16.gmra.mxu0 %v50
  %v86 = vpop.f32.mrf.mxu0
  %v87 = vadd.f32 %v40, %v86
  %v88 = vpop.f32.mrf.mxu0
  %v89 = vpop.f32.mrf.mxu0
  %v90 = vadd.f32 %v40, %v89
  %v91 = vpop.f32.mrf.mxu0
  %92 = vdwg.mxu0
  %93 = vst [vmem:[#allocation2] sm:$0xff] %v87
  %94 = vst [vmem:[#allocation2 + $0x8] sm:$0xff] %v90
  %v95 = vld [vmem:[%s3] sm:$0xf]
  %v96 = vld [vmem:[%s3 + $0x4] sm:$0xf]
  %v97 = vld [vmem:[%s4] sm:$0xf]
  %v98 = vld [vmem:[%s4 + $0x4] sm:$0xf]
  loop: start=0, step=1, limit=8
  $region34: #{lstm_module_forward.3} parent=0 // loop_pre_header
    _
  $region35: #{lstm_module_forward.3} parent=0 // loop_header
    %s100 = sphi 0, %s104
    %p101 = scmp.ge.s32.totalorder %s100, 8
    %v105 = vphi 0.0, %v193
    %v106 = vphi 0.0, %v187
    %v107 = vphi 0.0, %v275
    %v108 = vphi 0.0, %v269
  $region36: #{lstm_module_forward.3} parent=0 // loop_header_branch
    %103 = sbr.rel (%p101) target = $region40
  $region37: #{lstm_module_forward.3} parent=0 // loop_body
    %s109 = smul.u32 %s100, 2
    %s110 = ssub.s32 7, %s100
    %s111 = smul.u32 %s110, 2
    %s112 = scalar_lea.vmem [#allocation2], %s109
    %v113 = vld [vmem:[%s112] sm:$0x3]
    %s114 = scalar_lea.vmem [#allocation2], %s111
    %v115 = vld [vmem:[%s114] sm:$0x3]
    %v116 = vpack.c.bf16 %v105, %v105
    %118 = vrot.lane.b32.xlu0 %v116, 80
    %v119 = vpop.permute.xlu0 %118
    %v122 = vunpack.c.l.b16 %v95
    %v123 = vunpack.c.l.b16 %v96
    %v124 = vpack.c.b16 %v123, %v122
    %v127 = vsel %vm48, %v119, 0
    %129 = vmatprep.subr.bf16.mxu0 0
    %130 = vmatpush1.bf16.msra.mxu0 0
    %131 = vmatprep.subr.bf16.mxu0 0
    %132 = vmatpush1.bf16.msra.mxu0 0
    %133 = vmatprep.subr.bf16.mxu0 0
    %134 = vmatpush1.bf16.msra.mxu0 0
    %135 = vmatprep.subr.bf16.mxu0 0
    %136 = vmatpush1.bf16.msra.mxu0 0
    %137 = vmatprep.subr.bf16.mxu0 0
    %138 = vmatpush1.bf16.msra.mxu0 0
    %139 = vmatprep.subr.bf16.mxu0 0
    %140 = vmatpush1.bf16.msra.mxu0 0
    %141 = vmatprep.subr.bf16.mxu0 0
    %142 = vmatpush1.bf16.msra.mxu0 0
    %143 = vmatprep.subr.bf16.mxu0 0
    %144 = vmatpush1.bf16.msra.mxu0 %v124
    %145 = vmatprep.subr.bf16.mxu0 0
    %146 = vmatpush2.bf16.msra.mxu0 0
    %147 = vmatprep.subr.bf16.mxu0 0
    %148 = vmatpush2.bf16.msra.mxu0 0
    %149 = vmatprep.subr.bf16.mxu0 0
    %150 = vmatpush2.bf16.msra.mxu0 0
    %151 = vmatprep.subr.bf16.mxu0 0
    %152 = vmatpush2.bf16.msra.mxu0 0
    %153 = vmatprep.subr.bf16.mxu0 0
    %154 = vmatpush2.bf16.msra.mxu0 0
    %155 = vmatprep.subr.bf16.mxu0 0
    %156 = vmatpush2.bf16.msra.mxu0 0
    %157 = vmatprep.subr.bf16.mxu0 0
    %158 = vmatpush2.bf16.msra.mxu0 0
    %159 = vmatprep.subr.bf16.mxu0 0
    %160 = vmatpush2.bf16.msra.mxu0 0
    %161 = vmatprep.mubr.bf16.mxu0 0
    %162 = vmatmul.mubr.bf16.gmra.mxu0 %v127
    %v163 = vpop.f32.mrf.mxu0
    %v164 = vadd.f32 0.0, %v163
    %v165 = vpop.f32.mrf.mxu0
    %v166 = vpop.f32.mrf.mxu0
    %v167 = vpop.f32.mrf.mxu0
    %168 = vdwg.mxu0
    %v169 = vadd.f32 %v113, %v164
    %v170 = vxor.u32 %v169, 2147483648
    %v171 = vmul.f32 %v170, 1.442695
    %v172 = vpow.pop %v171
    %v173 = vadd.f32 %v172, 1.0
    %v174 = vrcp.pop %v173
    %v175 = vmul.f32 1.0, %v174
    %v176 = vtanh.pop %v169
    %v177 = vmul.f32 %v175, %v106
    %179 = vrot.lane.b32.xlu0 %v176, 96
    %v180 = vpop.permute.xlu0 %179
    %v182 = vmul.f32 %v175, %v180
    %184 = vrot.lane.b32.xlu0 %v182, 16
    %v185 = vpop.permute.xlu0 %184
    %v187 = vadd.f32 %v177, %v185
    %v188 = vtanh.pop %v187
    %190 = vrot.lane.b32.xlu0 %v188, 32
    %v191 = vpop.permute.xlu0 %190
    %v193 = vmul.f32 %v175, %v191
    %v194 = vpack.c.bf16 %v107, %v107
    %196 = vrot.lane.b32.xlu0 %v194, 16
    %v197 = vpop.permute.xlu0 %196
    %v200 = vunpack.c.l.b16 %v97
    %v201 = vunpack.c.l.b16 %v98
    %v202 = vpack.c.b16 %v201, %v200
    %v205 = vsel %vm48, %v197, 0
    %207 = vmatprep.subr.bf16.mxu0 0
    %208 = vmatpush1.bf16.msra.mxu0 0
    %209 = vmatprep.subr.bf16.mxu0 0
    %210 = vmatpush1.bf16.msra.mxu0 0
    %211 = vmatprep.subr.bf16.mxu0 0
    %212 = vmatpush1.bf16.msra.mxu0 0
    %213 = vmatprep.subr.bf16.mxu0 0
    %214 = vmatpush1.bf16.msra.mxu0 0
    %215 = vmatprep.subr.bf16.mxu0 0
    %216 = vmatpush1.bf16.msra.mxu0 0
    %217 = vmatprep.subr.bf16.mxu0 0
    %218 = vmatpush1.bf16.msra.mxu0 0
    %219 = vmatprep.subr.bf16.mxu0 0
    %220 = vmatpush1.bf16.msra.mxu0 0
    %221 = vmatprep.subr.bf16.mxu0 0
    %222 = vmatpush1.bf16.msra.mxu0 %v202
    %223 = vmatprep.subr.bf16.mxu0 0
    %224 = vmatpush2.bf16.msra.mxu0 0
    %225 = vmatprep.subr.bf16.mxu0 0
    %226 = vmatpush2.bf16.msra.mxu0 0
    %227 = vmatprep.subr.bf16.mxu0 0
    %228 = vmatpush2.bf16.msra.mxu0 0
    %229 = vmatprep.subr.bf16.mxu0 0
    %230 = vmatpush2.bf16.msra.mxu0 0
    %231 = vmatprep.subr.bf16.mxu0 0
    %232 = vmatpush2.bf16.msra.mxu0 0
    %233 = vmatprep.subr.bf16.mxu0 0
    %234 = vmatpush2.bf16.msra.mxu0 0
    %235 = vmatprep.subr.bf16.mxu0 0
    %236 = vmatpush2.bf16.msra.mxu0 0
    %237 = vmatprep.subr.bf16.mxu0 0
    %238 = vmatpush2.bf16.msra.mxu0 0
    %239 = vmatprep.mubr.bf16.mxu0 0
    %240 = vmatmul.mubr.bf16.gmra.mxu0 %v205
    %v241 = vpop.f32.mrf.mxu0
    %v242 = vadd.f32 0.0, %v241
    %v243 = vpop.f32.mrf.mxu0
    %v244 = vpop.f32.mrf.mxu0
    %v245 = vpop.f32.mrf.mxu0
    %246 = vdwg.mxu0
    %248 = vrot.lane.b32.xlu0 %v242, 64
    %v249 = vpop.permute.xlu0 %248
    %v251 = vadd.f32 %v115, %v249
    %v252 = vxor.u32 %v251, 2147483648
    %v253 = vmul.f32 %v252, 1.442695
    %v254 = vpow.pop %v253
    %v255 = vadd.f32 %v254, 1.0
    %v256 = vrcp.pop %v255
    %v257 = vmul.f32 1.0, %v256
    %v258 = vtanh.pop %v251
    %v259 = vmul.f32 %v257, %v108
    %261 = vrot.lane.b32.xlu0 %v258, 96
    %v262 = vpop.permute.xlu0 %261
    %v264 = vmul.f32 %v257, %v262
    %266 = vrot.lane.b32.xlu0 %v264, 16
    %v267 = vpop.permute.xlu0 %266
    %v269 = vadd.f32 %v259, %v267
    %v270 = vtanh.pop %v269
    %272 = vrot.lane.b32.xlu0 %v270, 32
    %v273 = vpop.permute.xlu0 %272
    %v275 = vmul.f32 %v257, %v273
    %277 = vrot.lane.b32.xlu0 %v193, 80
    %v278 = vpop.permute.xlu0 %277
    %s280 = scalar_lea.vmem [#allocation3], %s109
    %vm281 = vcmask 123904
    %282 = vst.msk [vmem:[%s280] sm:$0x3] %vm281, %v278
    %284 = vrot.lane.b32.xlu0 %v275, 16
    %v285 = vpop.permute.xlu0 %284
    %s287 = scalar_lea.vmem [#allocation4], %s111
    %288 = vst.msk [vmem:[%s287] sm:$0x3] %vm281, %v285
  $region38: #{lstm_module_forward.3} parent=0 // loop_footer
    %s104 = sadd.s32 1, %s100
  $region39: #{lstm_module_forward.3} parent=0 // loop_footer_branch
    %99 = sbr.rel target = $region35
  $region40: #{lstm_module_forward.3} parent=0 // loop_exit
    _
  %v289 = vld [vmem:[#allocation3] sm:$0xff]
  %v290 = vld [vmem:[#allocation3 + $0x8] sm:$0xff]
  %v291 = vpack.c.bf16 %v290, %v289
  %v292 = vld [vmem:[%s5] sm:$0xf]
  %v293 = vld [vmem:[%s5 + $0x4] sm:$0xf]
  %v294 = vld [vmem:[#allocation4] sm:$0xff]
  %v295 = vld [vmem:[#allocation4 + $0x8] sm:$0xff]
  %v296 = vpack.c.bf16 %v295, %v294
  %v297 = vld [vmem:[%s6] sm:$0xf]
  %v298 = vld [vmem:[%s6 + $0x4] sm:$0xf]
  %v301 = vunpack.c.l.b16 %v297
  %v302 = vunpack.c.l.b16 %v298
  %v303 = vpack.c.b16 %v302, %v301
  %v306 = vsel %vm48, %v296, 0
  %308 = vmatprep.subr.bf16.mxu0 0
  %309 = vmatpush1.bf16.msra.mxu0 0
  %310 = vmatprep.subr.bf16.mxu0 0
  %311 = vmatpush1.bf16.msra.mxu0 0
  %312 = vmatprep.subr.bf16.mxu0 0
  %313 = vmatpush1.bf16.msra.mxu0 0
  %314 = vmatprep.subr.bf16.mxu0 0
  %315 = vmatpush1.bf16.msra.mxu0 0
  %316 = vmatprep.subr.bf16.mxu0 0
  %317 = vmatpush1.bf16.msra.mxu0 0
  %318 = vmatprep.subr.bf16.mxu0 0
  %319 = vmatpush1.bf16.msra.mxu0 0
  %320 = vmatprep.subr.bf16.mxu0 0
  %321 = vmatpush1.bf16.msra.mxu0 0
  %322 = vmatprep.subr.bf16.mxu0 0
  %323 = vmatpush1.bf16.msra.mxu0 %v303
  %324 = vmatprep.subr.bf16.mxu0 0
  %325 = vmatpush2.bf16.msra.mxu0 0
  %326 = vmatprep.subr.bf16.mxu0 0
  %327 = vmatpush2.bf16.msra.mxu0 0
  %328 = vmatprep.subr.bf16.mxu0 0
  %329 = vmatpush2.bf16.msra.mxu0 0
  %330 = vmatprep.subr.bf16.mxu0 0
  %331 = vmatpush2.bf16.msra.mxu0 0
  %332 = vmatprep.subr.bf16.mxu0 0
  %333 = vmatpush2.bf16.msra.mxu0 0
  %334 = vmatprep.subr.bf16.mxu0 0
  %335 = vmatpush2.bf16.msra.mxu0 0
  %336 = vmatprep.subr.bf16.mxu0 0
  %337 = vmatpush2.bf16.msra.mxu0 0
  %338 = vmatprep.subr.bf16.mxu0 0
  %339 = vmatpush2.bf16.msra.mxu0 0
  %340 = vmatprep.mubr.bf16.mxu0 0
  %341 = vmatmul.mubr.bf16.gmra.mxu0 %v306
  %v342 = vpop.f32.mrf.mxu0
  %v343 = vadd.f32 0.0, %v342
  %v344 = vpop.f32.mrf.mxu0
  %v345 = vpop.f32.mrf.mxu0
  %v346 = vadd.f32 0.0, %v345
  %v347 = vpop.f32.mrf.mxu0
  %348 = vdwg.mxu0
  %v351 = vunpack.c.l.b16 %v292
  %v352 = vunpack.c.l.b16 %v293
  %v353 = vpack.c.b16 %v352, %v351
  %v356 = vsel %vm48, %v291, 0
  %358 = vmatprep.subr.bf16.mxu0 0
  %359 = vmatpush1.bf16.msra.mxu0 0
  %360 = vmatprep.subr.bf16.mxu0 0
  %361 = vmatpush1.bf16.msra.mxu0 0
  %362 = vmatprep.subr.bf16.mxu0 0
  %363 = vmatpush1.bf16.msra.mxu0 0
  %364 = vmatprep.subr.bf16.mxu0 0
  %365 = vmatpush1.bf16.msra.mxu0 0
  %366 = vmatprep.subr.bf16.mxu0 0
  %367 = vmatpush1.bf16.msra.mxu0 0
  %368 = vmatprep.subr.bf16.mxu0 0
  %369 = vmatpush1.bf16.msra.mxu0 0
  %370 = vmatprep.subr.bf16.mxu0 0
  %371 = vmatpush1.bf16.msra.mxu0 0
  %372 = vmatprep.subr.bf16.mxu0 0
  %373 = vmatpush1.bf16.msra.mxu0 %v353
  %374 = vmatprep.subr.bf16.mxu0 0
  %375 = vmatpush2.bf16.msra.mxu0 0
  %376 = vmatprep.subr.bf16.mxu0 0
  %377 = vmatpush2.bf16.msra.mxu0 0
  %378 = vmatprep.subr.bf16.mxu0 0
  %379 = vmatpush2.bf16.msra.mxu0 0
  %380 = vmatprep.subr.bf16.mxu0 0
  %381 = vmatpush2.bf16.msra.mxu0 0
  %382 = vmatprep.subr.bf16.mxu0 0
  %383 = vmatpush2.bf16.msra.mxu0 0
  %384 = vmatprep.subr.bf16.mxu0 0
  %385 = vmatpush2.bf16.msra.mxu0 0
  %386 = vmatprep.subr.bf16.mxu0 0
  %387 = vmatpush2.bf16.msra.mxu0 0
  %388 = vmatprep.subr.bf16.mxu0 0
  %389 = vmatpush2.bf16.msra.mxu0 0
  %390 = vmatprep.mubr.bf16.mxu0 0
  %391 = vmatmul.mubr.bf16.gmra.mxu0 %v356
  %v392 = vpop.f32.mrf.mxu0
  %v393 = vadd.f32 %v343, %v392
  %v394 = vpop.f32.mrf.mxu0
  %v395 = vpop.f32.mrf.mxu0
  %v396 = vadd.f32 %v346, %v395
  %v397 = vpop.f32.mrf.mxu0
  %398 = vdwg.mxu0
  %v399 = vld [vmem:[%s7] sm:$0x1]
  %v401 = vlaneseq
  %v402 = vshrl.u32 %v401, 7
  %v403 = vsub.s32 0, %v402
  %v404 = vrot.slane %v399, %v403
  %v406 = vadd.f32 %v393, %v404
  %v407 = vadd.f32 %v396, %v404
  %v408 = vmax.f32 %v406, 0.0
  %v409 = vmax.f32 %v407, 0.0
  %410 = vst.msk [vmem:[%s8] sm:$0xff] %vm48, %v408
  %411 = vst.msk [vmem:[%s8 + $0x8] sm:$0xff] %vm48, %v409
  // Predicated region
  $region41: #{lstm_module_forward.3} parent=0 // pred_check
    _
  $region42: #{lstm_module_forward.3} parent=0 // pred_check_branch
    %413 = sbr.rel (0) target = $region44
  $region43: #{lstm_module_forward.3} parent=0 // pred_region
    _
  $region44: #{lstm_module_forward.3} parent=0 // pred_fallthru
    _
  // Predicated region
  $region45: #{lstm_module_forward.3} parent=0 // pred_check
    _
  $region46: #{lstm_module_forward.3} parent=0 // pred_check_branch
    %415 = sbr.rel (0) target = $region48
  $region47: #{lstm_module_forward.3} parent=0 // pred_region
    _
  $region48: #{lstm_module_forward.3} parent=0 // pred_fallthru
    _

</llo_original>
